<compile_context>
chip_gen: v5e
topology: v5e:2x2
jax: 0.10.0
libtpu: 0.0.40
codegen_flags: <defaults>
</compile_context>

<pallas_src>
import jax
import jax.numpy as jnp
from jax import lax
from jax.experimental import pallas as pl
from jax.experimental.pallas import tpu as pltpu


def _round_up(a, m):
    return ((a + m - 1) // m) * m


def adder_relu_kernel(w_ref, b_ref, x_ref, o_ref, acc_ref):
    """One (n, pixel-tile, O-tile) output block; K accumulated over grid axis 3.

    w_ref  : (TK//8, TO, 8)  K chunk leading, O on sublanes, 8 k's on static lanes
    b_ref  : (TO, 1)
    x_ref  : (TK, TP)        im2col pixels, K on sublanes, pixels lane-dense
    o_ref  : (TO, TP)
    acc_ref: (TO, TP) f32    scratch, resident across the trailing K grid axis
    """
    k_axis = 3
    k_idx = pl.program_id(k_axis)
    last_k = pl.num_programs(k_axis) - 1

    to, tp = o_ref.shape
    n_chunks = x_ref.shape[0] // 8

    # k==0: start from zeros directly in registers (skip zero-store + reload of
    # the scratch). Stale/uninitialized scratch contents are discarded by the
    # select, never used.
    acc0 = jnp.where(k_idx == 0, jnp.zeros((to, tp), jnp.float32), acc_ref[...])

    def chunk_body(i, acc):
        base = pl.multiple_of(i * 8, 8)            # aligned dynamic sublane start
        x_chunk = x_ref[pl.ds(base, 8), :]         # (8, TP): full-vreg loads
        w_chunk = w_ref[i]                         # (TO, 8): dynamic leading index
        for r in range(8):                         # static 8-wide inner unroll
            # (TO,1) lane-broadcast and (1,TP) sublane-broadcast resolve on the
            # XLU; only the sub/abs/add chain lands on the 4 VALU slots.
            acc = acc + jnp.abs(w_chunk[:, r:r + 1] - x_chunk[r:r + 1, :])
        return acc

    unroll = 2 if (n_chunks % 2 == 0 and to * tp <= 16 * 1024) else 1
    acc = lax.fori_loop(0, n_chunks, chunk_body, acc0, unroll=unroll)

    @pl.when(k_idx == last_k)
    def _finalize():
        out = b_ref[...] - acc                     # bias + negated L1 sum
        o_ref[...] = jnp.maximum(out, 0.0).astype(o_ref.dtype)   # ReLU

    @pl.when(k_idx != last_k)
    def _carry():
        acc_ref[...] = acc                         # only when more K steps remain


def _im2col_nkl(x, ksize, stride, padding):
    """x: (N, C, H, W) -> X_col: (N, C*ks*ks, Hout*Wout), zero padded like F.unfold.

    K index ordering is c*ks*ks + kh*ks + kw, matching W.reshape(O, C*ks*ks).
    """
    N, C, H, W = x.shape
    Hout = (H - ksize + 2 * padding) // stride + 1
    Wout = (W - ksize + 2 * padding) // stride + 1
    xp = jnp.pad(x, ((0, 0), (0, 0), (padding, padding), (padding, padding)))
    cols = []
    for kh in range(ksize):
        for kw in range(ksize):
            cols.append(xp[:, :, kh:kh + stride * Hout:stride,
                              kw:kw + stride * Wout:stride])    # (N, C, Ho, Wo)
    xcol = jnp.stack(cols, axis=2)                              # (N, C, ks*ks, Ho, Wo)
    xcol = xcol.reshape(N, C * ksize * ksize, Hout * Wout)      # (N, K, L)
    return xcol, Hout, Wout


def _choose_tiles(N, O, K, L):
    # Output-channel tile: multiple of 8, capped at 32 (bounds acc vreg rows).
    O8 = _round_up(O, 8)
    TO = min(O8, 32)
    O_pad = _round_up(O8, TO)
    num_o = O_pad // TO

    # K: full (8-padded) K as a single trailing block when it fits comfortably,
    # otherwise 512-wide K blocks (multiple of both 8 and 128).
    K8 = _round_up(K, 8)
    TK = K8 if K8 <= 1024 else 512
    K_pad = _round_up(K8, TK)

    # Pixel tile: multiple of 128 under an acc-vreg budget, chosen to minimize
    # padding waste (kernel is VPU-bound -> padded lanes are wasted VALU work).
    # For N==1 / single-O-tile shapes keep >=2 pixel tiles so both v7x TCs work.
    ACC_VREG_BUDGET = 24
    max_tp = min(1024, max(128, (ACC_VREG_BUDGET * 1024 // TO) // 128 * 128))
    L128 = _round_up(L, 128)
    want_two_l_tiles = (N == 1 and num_o == 1 and L128 >= 256)
    best = None
    for tp in range(128, min(max_tp, L128) + 1, 128):
        l_pad = _round_up(L, tp)
        if want_two_l_tiles and l_pad // tp < 2:
            continue
        key = (l_pad, -tp)            # least padding first, then fewest grid steps
        if best is None or key < best[0]:
            best = (key, tp, l_pad)
    if best is None:
        tp = min(max_tp, L128)
        TP, L_pad = tp, _round_up(L, tp)
    else:
        TP, L_pad = best[1], best[2]
    return TO, O_pad, TK, K_pad, TP, L_pad


def adder_conv_relu(x, w, b, stride=1, padding=1):
    """x: (N,C,H,W) f32, w: (O,C,ks,ks) f32, b: (O,) f32 -> (N,O,Hout,Wout) f32."""
    N, C, H, W = x.shape
    O, Cw, kh, kw = w.shape
    assert C == Cw and kh == kw
    ks = kh

    xcol, Hout, Wout = _im2col_nkl(x, ks, stride, padding)      # (N, K, L)
    K = C * ks * ks
    L = Hout * Wout

    TO, O_pad, TK, K_pad, TP, L_pad = _choose_tiles(N, O, K, L)

    wcol = w.reshape(O, K).astype(jnp.float32)
    b2 = b.reshape(O, 1).astype(jnp.float32)
    xcol = xcol.astype(jnp.float32)

    # Zero padding along O/K/L is exact: |0 - 0| = 0, padded O rows are sliced off.
    if O_pad != O:
        wcol = jnp.pad(wcol, ((0, O_pad - O), (0, 0)))
        b2 = jnp.pad(b2, ((0, O_pad - O), (0, 0)))
    if K_pad != K:
        wcol = jnp.pad(wcol, ((0, 0), (0, K_pad - K)))
        xcol = jnp.pad(xcol, ((0, 0), (0, K_pad - K), (0, 0)))
    if L_pad != L:
        xcol = jnp.pad(xcol, ((0, 0), (0, 0), (0, L_pad - L)))

    # (O, K) -> (K/8, O, 8): chunk index becomes a leading ref dim (dynamic-index
    # friendly); the 8 k's of a chunk are static lane indices inside the kernel.
    w3 = wcol.reshape(O_pad, K_pad // 8, 8).transpose(1, 0, 2)

    num_l = L_pad // TP
    num_o = O_pad // TO
    num_k = K_pad // TK
    grid = (N, num_l, num_o, num_k)

    # VMEM: 2x double-buffered blocks + accumulator scratch (the w block's 8-lane
    # last dim is padded to 128 lanes in VMEM).
    footprint = (2 * (TK * TP * 4
                      + (TK // 8) * TO * 128 * 4
                      + TO * TP * 4
                      + TO * 128 * 4)
                 + TO * TP * 4)
    vmem_limit = int(min(max(2 * footprint, 32 * 1024 * 1024), 48 * 1024 * 1024))

    out = pl.pallas_call(
        adder_relu_kernel,
        out_shape=jax.ShapeDtypeStruct((N, O_pad, L_pad), jnp.float32),
        grid_spec=pltpu.PrefetchScalarGridSpec(
            num_scalar_prefetch=0,
            grid=grid,
            in_specs=[
                # weights: (TK//8, TO, 8) block; independent of n / pixel tile
                pl.BlockSpec((TK // 8, TO, 8), lambda n, li, oi, k: (k, oi, 0)),
                # bias: (TO, 1) block
                pl.BlockSpec((TO, 1), lambda n, li, oi, k: (oi, 0)),
                # im2col pixels: (TK, TP); index ignores oi, so with a single K
                # block the X tile is not re-fetched across output-channel steps.
                pl.BlockSpec((pl.Squeezed(), TK, TP),
                             lambda n, li, oi, k: (n, k, li)),
            ],
            # transpose-free output layout (N, O, L); resident across the K axis
            out_specs=pl.BlockSpec((pl.Squeezed(), TO, TP),
                                   lambda n, li, oi, k: (n, oi, li)),
            scratch_shapes=[pltpu.VMEM((TO, TP), jnp.float32)],
        ),
        compiler_params=pltpu.CompilerParams(
            dimension_semantics=("parallel", "parallel", "parallel", "arbitrary"),
            vmem_limit_bytes=vmem_limit,
        ),
    )(w3, b2, xcol)

    out = out[:, :O, :L].reshape(N, O, Hout, Wout)   # pure slice + reshape
    return out


def adder_conv_relu_ref(x, w, b, stride=1, padding=1):
    """Pure-JAX reference of the PyTorch forward, for validation."""
    N, C, H, W = x.shape
    O, _, ks, _ = w.shape
    Hout = (H - ks + 2 * padding) // stride + 1
    Wout = (W - ks + 2 * padding) // stride + 1
    xp = jnp.pad(x, ((0, 0), (0, 0), (padding, padding), (padding, padding)))
    out = jnp.zeros((N, O, Hout, Wout), jnp.float32)
    for kh in range(ks):
        for kw in range(ks):
            patch = xp[:, :, kh:kh + stride * Hout:stride,
                          kw:kw + stride * Wout:stride]          # (N, C, Ho, Wo)
            diff = jnp.abs(w[None, :, :, kh, kw, None, None] - patch[:, None, :, :, :])
            out = out - jnp.sum(diff, axis=2)
    out = out + b[None, :, None, None]
    return jnp.maximum(out, 0.0)


if __name__ == "__main__":
    key = jax.random.PRNGKey(0)
    k_x, k_w, k_b = jax.random.split(key, 3)

    N, C_in, C_out, H, W = 2, 4, 8, 16, 16
    ksize, stride, padding = 3, 1, 1

    x = jax.random.normal(k_x, (N, C_in, H, W), dtype=jnp.float32)
    # adder2d.__init__: adder = normal_(randn(O, C, ks, ks)); b = uniform_(zeros(O))
    w = jax.random.normal(k_w, (C_out, C_in, ksize, ksize), dtype=jnp.float32)
    b = jax.random.uniform(k_b, (C_out,), dtype=jnp.float32)

    fwd = jax.jit(lambda xx, ww, bb: adder_conv_relu(
        xx, ww, bb, stride=stride, padding=padding))
    y = jax.block_until_ready(fwd(x, w, b))

    y_ref = adder_conv_relu_ref(x, w, b, stride=stride, padding=padding)
    assert y.shape == (N, C_out, H, W)
    assert jnp.allclose(y, y_ref, atol=1e-3, rtol=1e-4), "mismatch vs reference"

    print("KERNEL_OK")
</pallas_src>

<mosaic_0001>
module attributes {stable_mosaic.version = 11 : i64} {
  func.func @adder_relu_kernel(%arg0: i32, %arg1: i32, %arg2: i32, %arg3: i32, %arg4: memref<5x8x8xf32, #tpu.memory_space<vmem>>, %arg5: memref<8x1xf32, #tpu.memory_space<vmem>>, %arg6: memref<1x40x256xf32, #tpu.memory_space<vmem>>, %arg7: memref<1x8x256xf32, #tpu.memory_space<vmem>>, %arg8: memref<8x256xf32, #tpu.memory_space<vmem>>) attributes {dimension_semantics = [#tpu.dimension_semantics<parallel>, #tpu.dimension_semantics<parallel>, #tpu.dimension_semantics<parallel>, #tpu.dimension_semantics<arbitrary>], iteration_bounds = array<i64: 2, 1, 1, 1>, scalar_prefetch = 0 : i64, scratch_operands = 1 : i64, tpu.core_type = #tpu.core_type<tc>, window_params = [{transform_indices = @transform_0, window_bounds = array<i64: 5, 8, 8>}, {transform_indices = @transform_1, window_bounds = array<i64: 8, 1>}, {transform_indices = @transform_2, window_bounds = array<i64: 1, 40, 256>}, {transform_indices = @transform_3, window_bounds = array<i64: 1, 8, 256>}]} {
    %c0_i32 = arith.constant 0 : i32
    %0 = arith.cmpi eq, %arg3, %c0_i32 : i32
    %cst = arith.constant 0.000000e+00 : f32
    %1 = vector.broadcast %cst : f32 to vector<8x256xf32>
    %c0 = arith.constant 0 : index
    %c0_0 = arith.constant 0 : index
    %2 = vector.load %arg8[%c0, %c0_0] : memref<8x256xf32, #tpu.memory_space<vmem>>, vector<8x256xf32>
    %3 = arith.select %0, %1, %2 : vector<8x256xf32>
    %c0_i32_1 = arith.constant 0 : i32
    %c5_i32 = arith.constant 5 : i32
    %4 = arith.addi %c0_i32_1, %c5_i32 : i32
    %c1_i32 = arith.constant 1 : i32
    %5 = scf.for %arg9 = %c0_i32_1 to %4 step %c1_i32 iter_args(%arg10 = %3) -> (vector<8x256xf32>)  : i32 {
      %c8_i32 = arith.constant 8 : i32
      %12 = arith.muli %arg9, %c8_i32 : i32
      %13 = tpu.assume_multiple %12, 8 : i32
      %c0_7 = arith.constant 0 : index
      %14 = arith.index_cast %13 : i32 to index
      %c0_8 = arith.constant 0 : index
      %15 = vector.load %arg6[%c0_7, %14, %c0_8] : memref<1x40x256xf32, #tpu.memory_space<vmem>>, vector<1x8x256xf32>
      %16 = vector.shape_cast %15 : vector<1x8x256xf32> to vector<8x256xf32>
      %17 = arith.index_cast %arg9 : i32 to index
      %c0_9 = arith.constant 0 : index
      %c0_10 = arith.constant 0 : index
      %18 = vector.load %arg4[%17, %c0_9, %c0_10] : memref<5x8x8xf32, #tpu.memory_space<vmem>>, vector<1x8x8xf32>
      %19 = vector.shape_cast %18 : vector<1x8x8xf32> to vector<8x8xf32>
      %20 = vector.extract_strided_slice %19 {offsets = [0, 0], sizes = [8, 1], strides = [1, 1]} : vector<8x8xf32> to vector<8x1xf32>
      %21 = vector.extract_strided_slice %16 {offsets = [0, 0], sizes = [1, 256], strides = [1, 1]} : vector<8x256xf32> to vector<1x256xf32>
      %22 = vector.broadcast %20 : vector<8x1xf32> to vector<8x256xf32>
      %23 = vector.broadcast %21 : vector<1x256xf32> to vector<8x256xf32>
      %24 = arith.subf %22, %23 : vector<8x256xf32>
      %25 = math.absf %24 : vector<8x256xf32>
      %26 = arith.addf %arg10, %25 : vector<8x256xf32>
      %27 = vector.extract_strided_slice %19 {offsets = [0, 1], sizes = [8, 1], strides = [1, 1]} : vector<8x8xf32> to vector<8x1xf32>
      %28 = vector.extract_strided_slice %16 {offsets = [1, 0], sizes = [1, 256], strides = [1, 1]} : vector<8x256xf32> to vector<1x256xf32>
      %29 = vector.broadcast %27 : vector<8x1xf32> to vector<8x256xf32>
      %30 = vector.broadcast %28 : vector<1x256xf32> to vector<8x256xf32>
      %31 = arith.subf %29, %30 : vector<8x256xf32>
      %32 = math.absf %31 : vector<8x256xf32>
      %33 = arith.addf %26, %32 : vector<8x256xf32>
      %34 = vector.extract_strided_slice %19 {offsets = [0, 2], sizes = [8, 1], strides = [1, 1]} : vector<8x8xf32> to vector<8x1xf32>
      %35 = vector.extract_strided_slice %16 {offsets = [2, 0], sizes = [1, 256], strides = [1, 1]} : vector<8x256xf32> to vector<1x256xf32>
      %36 = vector.broadcast %34 : vector<8x1xf32> to vector<8x256xf32>
      %37 = vector.broadcast %35 : vector<1x256xf32> to vector<8x256xf32>
      %38 = arith.subf %36, %37 : vector<8x256xf32>
      %39 = math.absf %38 : vector<8x256xf32>
      %40 = arith.addf %33, %39 : vector<8x256xf32>
      %41 = vector.extract_strided_slice %19 {offsets = [0, 3], sizes = [8, 1], strides = [1, 1]} : vector<8x8xf32> to vector<8x1xf32>
      %42 = vector.extract_strided_slice %16 {offsets = [3, 0], sizes = [1, 256], strides = [1, 1]} : vector<8x256xf32> to vector<1x256xf32>
      %43 = vector.broadcast %41 : vector<8x1xf32> to vector<8x256xf32>
      %44 = vector.broadcast %42 : vector<1x256xf32> to vector<8x256xf32>
      %45 = arith.subf %43, %44 : vector<8x256xf32>
      %46 = math.absf %45 : vector<8x256xf32>
      %47 = arith.addf %40, %46 : vector<8x256xf32>
      %48 = vector.extract_strided_slice %19 {offsets = [0, 4], sizes = [8, 1], strides = [1, 1]} : vector<8x8xf32> to vector<8x1xf32>
      %49 = vector.extract_strided_slice %16 {offsets = [4, 0], sizes = [1, 256], strides = [1, 1]} : vector<8x256xf32> to vector<1x256xf32>
      %50 = vector.broadcast %48 : vector<8x1xf32> to vector<8x256xf32>
      %51 = vector.broadcast %49 : vector<1x256xf32> to vector<8x256xf32>
      %52 = arith.subf %50, %51 : vector<8x256xf32>
      %53 = math.absf %52 : vector<8x256xf32>
      %54 = arith.addf %47, %53 : vector<8x256xf32>
      %55 = vector.extract_strided_slice %19 {offsets = [0, 5], sizes = [8, 1], strides = [1, 1]} : vector<8x8xf32> to vector<8x1xf32>
      %56 = vector.extract_strided_slice %16 {offsets = [5, 0], sizes = [1, 256], strides = [1, 1]} : vector<8x256xf32> to vector<1x256xf32>
      %57 = vector.broadcast %55 : vector<8x1xf32> to vector<8x256xf32>
      %58 = vector.broadcast %56 : vector<1x256xf32> to vector<8x256xf32>
      %59 = arith.subf %57, %58 : vector<8x256xf32>
      %60 = math.absf %59 : vector<8x256xf32>
      %61 = arith.addf %54, %60 : vector<8x256xf32>
      %62 = vector.extract_strided_slice %19 {offsets = [0, 6], sizes = [8, 1], strides = [1, 1]} : vector<8x8xf32> to vector<8x1xf32>
      %63 = vector.extract_strided_slice %16 {offsets = [6, 0], sizes = [1, 256], strides = [1, 1]} : vector<8x256xf32> to vector<1x256xf32>
      %64 = vector.broadcast %62 : vector<8x1xf32> to vector<8x256xf32>
      %65 = vector.broadcast %63 : vector<1x256xf32> to vector<8x256xf32>
      %66 = arith.subf %64, %65 : vector<8x256xf32>
      %67 = math.absf %66 : vector<8x256xf32>
      %68 = arith.addf %61, %67 : vector<8x256xf32>
      %69 = vector.extract_strided_slice %19 {offsets = [0, 7], sizes = [8, 1], strides = [1, 1]} : vector<8x8xf32> to vector<8x1xf32>
      %70 = vector.extract_strided_slice %16 {offsets = [7, 0], sizes = [1, 256], strides = [1, 1]} : vector<8x256xf32> to vector<1x256xf32>
      %71 = vector.broadcast %69 : vector<8x1xf32> to vector<8x256xf32>
      %72 = vector.broadcast %70 : vector<1x256xf32> to vector<8x256xf32>
      %73 = arith.subf %71, %72 : vector<8x256xf32>
      %74 = math.absf %73 : vector<8x256xf32>
      %75 = arith.addf %68, %74 : vector<8x256xf32>
      scf.yield %75 : vector<8x256xf32>
    }
    %c5_i32_2 = arith.constant 5 : i32
    %c0_i32_3 = arith.constant 0 : i32
    %6 = arith.cmpi eq, %arg3, %c0_i32_3 : i32
    %7 = arith.extui %6 : i1 to i32
    %c0_i32_4 = arith.constant 0 : i32
    %8 = arith.cmpi ne, %7, %c0_i32_4 : i32
    scf.if %8 {
      %c0_7 = arith.constant 0 : index
      %c0_8 = arith.constant 0 : index
      %12 = vector.load %arg5[%c0_7, %c0_8] : memref<8x1xf32, #tpu.memory_space<vmem>>, vector<8x1xf32>
      %13 = vector.broadcast %12 : vector<8x1xf32> to vector<8x256xf32>
      %14 = arith.subf %13, %5 : vector<8x256xf32>
      %cst_9 = arith.constant 0.000000e+00 : f32
      %15 = vector.broadcast %cst_9 : f32 to vector<8x256xf32>
      %16 = arith.maximumf %14, %15 : vector<8x256xf32>
      %c0_10 = arith.constant 0 : index
      %c0_11 = arith.constant 0 : index
      %c0_12 = arith.constant 0 : index
      %17 = vector.load %arg7[%c0_10, %c0_11, %c0_12] : memref<1x8x256xf32, #tpu.memory_space<vmem>>, vector<1x8x256xf32>
      %18 = vector.shape_cast %17 : vector<1x8x256xf32> to vector<8x256xf32>
      %19 = vector.shape_cast %16 : vector<8x256xf32> to vector<1x8x256xf32>
      tpu.vector_store %arg7[%c0_10, %c0_11, %c0_12], %19 {strides = array<i32>} : memref<1x8x256xf32, #tpu.memory_space<vmem>>, vector<1x8x256xf32>,
    } else {
    }
    %c0_i32_5 = arith.constant 0 : i32
    %9 = arith.cmpi ne, %arg3, %c0_i32_5 : i32
    %10 = arith.extui %9 : i1 to i32
    %c0_i32_6 = arith.constant 0 : i32
    %11 = arith.cmpi ne, %10, %c0_i32_6 : i32
    scf.if %11 {
      %c0_7 = arith.constant 0 : index
      %c0_8 = arith.constant 0 : index
      %12 = vector.load %arg8[%c0_7, %c0_8] : memref<8x256xf32, #tpu.memory_space<vmem>>, vector<8x256xf32>
      tpu.vector_store %arg8[%c0_7, %c0_8], %5 {strides = array<i32>} : memref<8x256xf32, #tpu.memory_space<vmem>>, vector<8x256xf32>,
    } else {
    }
    return
  }
  func.func @transform_0(%arg0: i32, %arg1: i32, %arg2: i32, %arg3: i32) -> (i32, i32, i32) {
    %c0_i32 = arith.constant 0 : i32
    %c0_i32_0 = arith.constant 0 : i32
    return %arg3, %arg2, %c0_i32 : i32, i32, i32
  }
  func.func @transform_1(%arg0: i32, %arg1: i32, %arg2: i32, %arg3: i32) -> (i32, i32) {
    %c0_i32 = arith.constant 0 : i32
    %c0_i32_0 = arith.constant 0 : i32
    return %arg2, %c0_i32 : i32, i32
  }
  func.func @transform_2(%arg0: i32, %arg1: i32, %arg2: i32, %arg3: i32) -> (i32, i32, i32) {
    %c0_i32 = arith.constant 0 : i32
    return %arg0, %arg3, %arg1 : i32, i32, i32
  }
  func.func @transform_3(%arg0: i32, %arg1: i32, %arg2: i32, %arg3: i32) -> (i32, i32, i32) {
    %c0_i32 = arith.constant 0 : i32
    return %arg0, %arg2, %arg1 : i32, i32, i32
  }
}

</mosaic_0001>

<llo_original>
// kernel: _lambda_.1
$region0: #{_lambda_.1}
  #allocation0 [shape = 'u32[]', space=smem, size = 0x4, offset = 0x4, fixed_abs, tag = 'smem constant byte address 0x4 - core index']
  #allocation1 [shape = 'u32[72,128]{1,0:T(1,128)}', space=vmem, size = 0x9000, scoped, tag = 'internal scratch']
  #allocation2 [shape = 'f32[8,256]{1,0:T(8,128)}', space=vmem, size = 0x2000, scoped, tag = 'scratch operand']
  %s0 = inlined_call_operand.vmem [shape: f32[5,8,8], index: 0, kind: input, shape index: {}]
  %s1 = inlined_call_operand.vmem [shape: f32[8,1], index: 1, kind: input, shape index: {}]
  %s2 = inlined_call_operand.vmem [shape: f32[2,40,256], index: 2, kind: input, shape index: {}]
  %s3 = inlined_call_operand.vmem [shape: f32[2,8,256], index: 3, kind: output, shape index: {}]
  %s4 = sld [smem:[#allocation0]]
  $region60: #{_lambda_.1} parent=0
    _
  %s6 = ssub.s32 1, %s4
  %s7 = scalar_select 0, %s6, %s4
  loop: start=0, step=1, limit=4
  $region2: #{_lambda_.1} parent=0 // loop_pre_header
    _
  $region3: #{_lambda_.1} parent=0 // loop_header
    %s9 = sphi 0, %s13
    %p10 = scmp.ge.s32.totalorder %s9, 4
    %s16 = sphi 0, %s42
    %s17 = sphi 0, %s38
    %s18 = sphi 0, %s34
    %s19 = sphi 0, %s30
    %s20 = sphi 0, %s16
    %s21 = sphi 0, %s17
    %s22 = sphi 0, %s18
    %s23 = sphi 0, %s19
    %s24 = sphi 0, %s20
    %s25 = sphi 0, %s21
    %s26 = sphi 0, %s22
    %s27 = sphi 0, %s23
    %s47 = sphi 0, %s49
    %s50 = sphi 0, %s47
    %s51 = sphi 0, %s50
    %s67 = sphi 0, %s51
    %s73 = sphi 0, %s75
    %s76 = sphi 0, %s73
    %s77 = sphi 0, %s76
    %s93 = sphi 0, %s77
    %s103 = sphi 0, %s105
    %s106 = sphi 0, %s103
    %s107 = sphi 0, %s106
    %s123 = sphi 0, %s107
    %s133 = sphi 0, %s135
    %s136 = sphi 0, %s133
    %s137 = sphi 0, %s136
    %s153 = sphi 0, %s137
  $region4: #{_lambda_.1} parent=0 // loop_header_branch
    %12 = sbr.rel (%p10) target = $region8
  $region5: #{_lambda_.1} parent=0 // loop_body
    %s14 = ssub.s32 %s9, 1
    %s15 = ssub.s32 %s9, 2
    %s28 = sadd.s32 1, %s19
    %p29 = scmp.ge.s32.totalorder %s28, 1
    %s30 = scalar_select %p29, 0, %s28
    %s31 = sadd.s32 1, %s18
    %s32 = scalar_select %p29, %s31, %s18
    %p33 = scmp.ge.s32.totalorder %s32, 1
    %s34 = scalar_select %p33, 0, %s32
    %s35 = sadd.s32 1, %s17
    %s36 = scalar_select %p33, %s35, %s17
    %p37 = scmp.ge.s32.totalorder %s36, 1
    %s38 = scalar_select %p37, 0, %s36
    %s39 = sadd.s32 1, %s16
    %s40 = scalar_select %p37, %s39, %s16
    %p41 = scmp.ge.s32.totalorder %s40, 2
    %s42 = scalar_select %p41, 0, %s40
    %s43 = ssub.s32 %s19, %s30
    %s44 = ssub.s32 %s18, %s34
    %s45 = sor.u32 %s43, %s44
    %p46 = scmp.eq.s32.totalorder %s45, 0
    %s48 = sadd.s32 %s47, 1
    %s49 = scalar_select %p46, %s47, %s48
    %p52 = pneg %p46
    %p53 = scmp.eq.s32.totalorder %s9, 1
    %p54 = por %p52, %p53
    %p55 = scmp.ne.s32.totalorder %s47, %s50
    %p56 = scmp.eq.s32.totalorder %s9, 0
    %p57 = por %p55, %p56
    %p58 = scmp.ne.s32.totalorder %s47, %s50
    %p59 = scmp.eq.s32.totalorder %s14, 1
    %p60 = por %p58, %p59
    %p61 = scmp.ne.s32.totalorder %s50, %s51
    %p62 = scmp.eq.s32.totalorder %s14, 0
    %p63 = por %p61, %p62
    %p64 = scmp.ne.s32.totalorder %s50, %s51
    %p65 = scmp.eq.s32.totalorder %s15, 1
    %p66 = por %p64, %p65
    %p68 = scmp.ne.s32.totalorder %s51, %s67
    %p69 = scmp.eq.s32.totalorder %s15, 0
    %p70 = por %p68, %p69
    %s71 = ssub.s32 %s18, %s34
    %p72 = scmp.eq.s32.totalorder %s71, 0
    %s74 = sadd.s32 %s73, 1
    %s75 = scalar_select %p72, %s73, %s74
    %p78 = pneg %p72
    %p79 = scmp.eq.s32.totalorder %s9, 1
    %p80 = por %p78, %p79
    %p81 = scmp.ne.s32.totalorder %s73, %s76
    %p82 = scmp.eq.s32.totalorder %s9, 0
    %p83 = por %p81, %p82
    %p84 = scmp.ne.s32.totalorder %s73, %s76
    %p85 = scmp.eq.s32.totalorder %s14, 1
    %p86 = por %p84, %p85
    %p87 = scmp.ne.s32.totalorder %s76, %s77
    %p88 = scmp.eq.s32.totalorder %s14, 0
    %p89 = por %p87, %p88
    %p90 = scmp.ne.s32.totalorder %s76, %s77
    %p91 = scmp.eq.s32.totalorder %s15, 1
    %p92 = por %p90, %p91
    %p94 = scmp.ne.s32.totalorder %s77, %s93
    %p95 = scmp.eq.s32.totalorder %s15, 0
    %p96 = por %p94, %p95
    %s97 = ssub.s32 %s16, %s42
    %s98 = ssub.s32 %s19, %s30
    %s99 = sor.u32 %s97, %s98
    %s100 = ssub.s32 %s17, %s38
    %s101 = sor.u32 %s99, %s100
    %p102 = scmp.eq.s32.totalorder %s101, 0
    %s104 = sadd.s32 %s103, 1
    %s105 = scalar_select %p102, %s103, %s104
    %p108 = pneg %p102
    %p109 = scmp.eq.s32.totalorder %s9, 1
    %p110 = por %p108, %p109
    %p111 = scmp.ne.s32.totalorder %s103, %s106
    %p112 = scmp.eq.s32.totalorder %s9, 0
    %p113 = por %p111, %p112
    %p114 = scmp.ne.s32.totalorder %s103, %s106
    %p115 = scmp.eq.s32.totalorder %s14, 1
    %p116 = por %p114, %p115
    %p117 = scmp.ne.s32.totalorder %s106, %s107
    %p118 = scmp.eq.s32.totalorder %s14, 0
    %p119 = por %p117, %p118
    %p120 = scmp.ne.s32.totalorder %s106, %s107
    %p121 = scmp.eq.s32.totalorder %s15, 1
    %p122 = por %p120, %p121
    %p124 = scmp.ne.s32.totalorder %s107, %s123
    %p125 = scmp.eq.s32.totalorder %s15, 0
    %p126 = por %p124, %p125
    %s127 = ssub.s32 %s16, %s42
    %s128 = ssub.s32 %s18, %s34
    %s129 = sor.u32 %s127, %s128
    %s130 = ssub.s32 %s17, %s38
    %s131 = sor.u32 %s129, %s130
    %p132 = scmp.eq.s32.totalorder %s131, 0
    %s134 = sadd.s32 %s133, 1
    %s135 = scalar_select %p132, %s133, %s134
    %p138 = pneg %p132
    %p139 = scmp.eq.s32.totalorder %s9, 1
    %p140 = por %p138, %p139
    %p141 = scmp.ne.s32.totalorder %s133, %s136
    %p142 = scmp.eq.s32.totalorder %s9, 0
    %p143 = por %p141, %p142
    %p144 = scmp.ne.s32.totalorder %s133, %s136
    %p145 = scmp.eq.s32.totalorder %s14, 1
    %p146 = por %p144, %p145
    %p147 = scmp.ne.s32.totalorder %s136, %s137
    %p148 = scmp.eq.s32.totalorder %s14, 0
    %p149 = por %p147, %p148
    %p150 = scmp.ne.s32.totalorder %s136, %s137
    %p151 = scmp.eq.s32.totalorder %s15, 1
    %p152 = por %p150, %p151
    %p154 = scmp.ne.s32.totalorder %s137, %s153
    %p155 = scmp.eq.s32.totalorder %s15, 0
    %p156 = por %p154, %p155
    %p157 = scmp.le.s32.totalorder 1, %s9
    %p158 = scmp.lt.s32.totalorder %s9, 3
    %p159 = pnand %p157, %p158
    %p160 = pneg %p159
    // Predicated region
    $region9: #{_lambda_.1} parent=5 // pred_check
      _
    $region10: #{_lambda_.1} parent=5 // pred_check_branch
      %162 = sbr.rel (%p159) target = $region12
    $region11: #{_lambda_.1} parent=5 // pred_region
      %s163 = ssub.s32 %s9, 1
      // Predicated region
      $region13: #{_lambda_.1} parent=11 // pred_check
        %p164 = pneg %p63
      $region14: #{_lambda_.1} parent=11 // pred_check_branch
        %166 = sbr.rel (%p164) target = $region16
      $region15: #{_lambda_.1} parent=11 // pred_region
        %s167 = smul.u32 5, %s23
        %p168 = scmp.lt.s32.totalorder %s167, 4
        %s169 = scalar_select %p168, %s167, 4
        %p170 = scmp.lt.s32.totalorder %s22, 0
        %s171 = scalar_select %p170, %s22, 0
        %s172 = sadd.s32 %s171, %s169
        %s173 = smul.addr %s172, 8
        %s174 = scalar_lea.vmem %s0, %s173
        %s175 = smul.u32 5, %s23
      $region16: #{_lambda_.1} parent=11 // pred_fallthru
        _
      // Predicated region
      $region17: #{_lambda_.1} parent=11 // pred_check
        %p176 = pneg %p89
      $region18: #{_lambda_.1} parent=11 // pred_check_branch
        %178 = sbr.rel (%p176) target = $region20
      $region19: #{_lambda_.1} parent=11 // pred_region
        %p179 = scmp.lt.s32.totalorder %s22, 0
        %s180 = scalar_select %p179, %s22, 0
        %s181 = smul.addr %s180, 8
        %s182 = scalar_lea.vmem %s1, %s181
      $region20: #{_lambda_.1} parent=11 // pred_fallthru
        _
    $region12: #{_lambda_.1} parent=5 // pred_fallthru
      _
    %p183 = scmp.lt.s32.totalorder %s9, 2
    // Predicated region
    $region21: #{_lambda_.1} parent=5 // pred_check
      %p184 = pneg %p183
    $region22: #{_lambda_.1} parent=5 // pred_check_branch
      %186 = sbr.rel (%p184) target = $region24
    $region23: #{_lambda_.1} parent=5 // pred_region
      // Predicated region
      $region25: #{_lambda_.1} parent=23 // pred_check
        %p187 = pneg %p113
      $region26: #{_lambda_.1} parent=23 // pred_check_branch
        %189 = sbr.rel (%p187) target = $region28
      $region27: #{_lambda_.1} parent=23 // pred_region
        %s190 = smul.u32 5, %s19
        %s191 = smul.u32 2, %s17
        %p192 = scmp.lt.s32.totalorder %s16, 1
        %s193 = scalar_select %p192, %s16, 1
        %p194 = scmp.lt.s32.totalorder %s190, 4
        %s195 = scalar_select %p194, %s190, 4
        %p196 = scmp.lt.s32.totalorder %s191, 1
        %s197 = scalar_select %p196, %s191, 1
        %s198 = smul.addr %s195, 2
        %s199 = sadd.s32 %s197, %s198
        %s200 = smul.addr %s193, 10
        %s201 = sadd.s32 %s199, %s200
        %s202 = smul.addr %s201, 8
        %s203 = scalar_lea.vmem %s2, %s202
        %s204 = smul.u32 5, %s19
        %s205 = smul.u32 2, %s17
      $region28: #{_lambda_.1} parent=23 // pred_fallthru
        _
    $region24: #{_lambda_.1} parent=5 // pred_fallthru
      _
    %p206 = scmp.le.s32.totalorder 1, %s9
    %p207 = scmp.lt.s32.totalorder %s9, 3
    %p208 = pnand %p206, %p207
    %p209 = pneg %p208
    // Predicated region
    $region29: #{_lambda_.1} parent=5 // pred_check
      _
    $region30: #{_lambda_.1} parent=5 // pred_check_branch
      %211 = sbr.rel (%p208) target = $region32
    $region31: #{_lambda_.1} parent=5 // pred_region
      %s212 = ssub.s32 %s9, 1
      %s213 = smul.u32 5, %s23
      %p214 = scmp.lt.s32.totalorder %s213, 4
      %s215 = scalar_select %p214, %s213, 4
      %p216 = scmp.lt.s32.totalorder %s22, 0
      %s217 = scalar_select %p216, %s22, 0
      %s218 = sadd.s32 %s217, %s215
      %s219 = smul.addr %s218, 8
      %s220 = scalar_lea.vmem %s0, %s219
      %p221 = pneg %p63
      %p222 = pneg %p60
      %p223 = scmp.lt.s32.totalorder %s22, 0
      %s224 = scalar_select %p223, %s22, 0
      %s225 = smul.addr %s224, 8
      %s226 = scalar_lea.vmem %s1, %s225
      %p227 = pneg %p89
      %p228 = pneg %p86
      %s229 = smul.u32 5, %s23
      %s230 = smul.u32 2, %s21
      %p231 = scmp.lt.s32.totalorder %s20, 1
      %s232 = scalar_select %p231, %s20, 1
      %p233 = scmp.lt.s32.totalorder %s229, 4
      %s234 = scalar_select %p233, %s229, 4
      %p235 = scmp.lt.s32.totalorder %s230, 1
      %s236 = scalar_select %p235, %s230, 1
      %s237 = smul.addr %s234, 2
      %s238 = sadd.s32 %s236, %s237
      %s239 = smul.addr %s232, 10
      %s240 = sadd.s32 %s238, %s239
      %s241 = smul.addr %s240, 8
      %s242 = scalar_lea.vmem %s2, %s241
      %p243 = pneg %p119
      %p244 = pneg %p116
      %p245 = pneg %p149
      %p246 = pneg %p146
      %s247 = smul.u32 2, %s21
      %p248 = scmp.lt.s32.totalorder %s20, 1
      %s249 = scalar_select %p248, %s20, 1
      %p250 = scmp.lt.s32.totalorder %s22, 0
      %s251 = scalar_select %p250, %s22, 0
      %p252 = scmp.lt.s32.totalorder %s247, 1
      %s253 = scalar_select %p252, %s247, 1
      %s254 = smul.addr %s251, 2
      %s255 = sadd.s32 %s253, %s254
      %s256 = smul.addr %s249, 2
      %s257 = sadd.s32 %s255, %s256
      %s258 = smul.addr %s257, 8
      %s259 = scalar_lea.vmem %s3, %s258
      %s260 = smul.u32 5, %s23
      %p261 = scmp.lt.s32.totalorder %s260, 4
      %s262 = scalar_select %p261, %s260, 4
      %p263 = scmp.lt.s32.totalorder %s22, 0
      %s264 = scalar_select %p263, %s22, 0
      %s265 = sadd.s32 %s264, %s262
      %s266 = smul.addr %s265, 8
      %s267 = scalar_lea.vmem %s0, %s266
      %s268 = smul.u32 5, %s23
      %p269 = scmp.lt.s32.totalorder %s22, 0
      %s270 = scalar_select %p269, %s22, 0
      %s271 = smul.addr %s270, 8
      %s272 = scalar_lea.vmem %s1, %s271
      %s273 = smul.u32 5, %s23
      %s274 = smul.u32 2, %s21
      %p275 = scmp.lt.s32.totalorder %s20, 1
      %s276 = scalar_select %p275, %s20, 1
      %p277 = scmp.lt.s32.totalorder %s273, 4
      %s278 = scalar_select %p277, %s273, 4
      %p279 = scmp.lt.s32.totalorder %s274, 1
      %s280 = scalar_select %p279, %s274, 1
      %s281 = smul.addr %s278, 2
      %s282 = sadd.s32 %s280, %s281
      %s283 = smul.addr %s276, 10
      %s284 = sadd.s32 %s282, %s283
      %s285 = smul.addr %s284, 8
      %s286 = scalar_lea.vmem %s2, %s285
      %s287 = smul.u32 5, %s23
      %s288 = smul.u32 2, %s21
      %s289 = smul.u32 2, %s21
      %p290 = scmp.lt.s32.totalorder %s20, 1
      %s291 = scalar_select %p290, %s20, 1
      %p292 = scmp.lt.s32.totalorder %s22, 0
      %s293 = scalar_select %p292, %s22, 0
      %p294 = scmp.lt.s32.totalorder %s289, 1
      %s295 = scalar_select %p294, %s289, 1
      %s296 = smul.addr %s293, 2
      %s297 = sadd.s32 %s295, %s296
      %s298 = smul.addr %s291, 2
      %s299 = sadd.s32 %s297, %s298
      %s300 = smul.addr %s299, 8
      %s301 = scalar_lea.vmem %s3, %s300
      %s302 = smul.u32 2, %s21
      %p303 = scmp.eq.s32.totalorder %s23, 0
      %v304 = vld [vmem:[#allocation2] sm:$0xff]
      %v305 = vld [vmem:[#allocation2 + $0x8] sm:$0xff]
      %s306 = scalar_select %p303, 1, 0
      %v307 = vstv %s306
      %vm308 = vcmp.eq.s32.totalorder %v307, 1
      %v309 = vsel %vm308, 0.0, %v304
      %v310 = vsel %vm308, 0.0, %v305
      loop: start=0, step=1, limit=5
      $region33: #{_lambda_.1} parent=31 // loop_pre_header
        _
      $region34: #{_lambda_.1} parent=31 // loop_header
        %s312 = sphi 0, %s316
        %p313 = scmp.ge.s32.totalorder %s312, 5
        %v317 = vphi %v309, %v424
        %v318 = vphi %v310, %v425
      $region35: #{_lambda_.1} parent=31 // loop_header_branch
        %315 = sbr.rel (%p313) target = $region39
      $region36: #{_lambda_.1} parent=31 // loop_body
        %s319 = smul.u32 %s312, 8
        %s320 = sshra.s32 %s319, 3
        %s321 = sand.u32 %s319, 7
        %s322 = smul.u32 %s320, 2
        %s323 = smul.addr %s322, 8
        %s324 = scalar_lea.vmem %s286, %s323
        %v325 = vld [vmem:[%s324] sm:$0xff]
        %v326 = vld [vmem:[%s324 + $0x8] sm:$0xff]
        %s327 = scalar_lea.vmem %s267, %s319
        %v328 = vld [vmem:[%s327] sm:$0xff]
        %330 = vset.pattern.permute.xlu0 0
        %331 = vperm.xlu0 %330, %v328
        %v332 = vpop.permute.xlu0 %331
        %v334 = vperm.slane %v325, 0
        %v335 = vperm.slane %v326, 0
        %v336 = vsub.f32 %v332, %v334
        %v337 = vsub.f32 %v332, %v335
        %v338 = vand.u32 2147483647, %v336
        %v339 = vand.u32 2147483647, %v337
        %v340 = vadd.f32 %v317, %v338
        %v341 = vadd.f32 %v318, %v339
        %342 = vset.pattern.permute.xlu0 1
        %343 = vperm.xlu0 %342, %v328
        %v344 = vpop.permute.xlu0 %343
        %v346 = vperm.slane %v325, 1
        %v347 = vperm.slane %v326, 1
        %v348 = vsub.f32 %v344, %v346
        %v349 = vsub.f32 %v344, %v347
        %v350 = vand.u32 2147483647, %v348
        %v351 = vand.u32 2147483647, %v349
        %v352 = vadd.f32 %v340, %v350
        %v353 = vadd.f32 %v341, %v351
        %354 = vset.pattern.permute.xlu0 2
        %355 = vperm.xlu0 %354, %v328
        %v356 = vpop.permute.xlu0 %355
        %v358 = vperm.slane %v325, 2
        %v359 = vperm.slane %v326, 2
        %v360 = vsub.f32 %v356, %v358
        %v361 = vsub.f32 %v356, %v359
        %v362 = vand.u32 2147483647, %v360
        %v363 = vand.u32 2147483647, %v361
        %v364 = vadd.f32 %v352, %v362
        %v365 = vadd.f32 %v353, %v363
        %366 = vset.pattern.permute.xlu0 3
        %367 = vperm.xlu0 %366, %v328
        %v368 = vpop.permute.xlu0 %367
        %v370 = vperm.slane %v325, 3
        %v371 = vperm.slane %v326, 3
        %v372 = vsub.f32 %v368, %v370
        %v373 = vsub.f32 %v368, %v371
        %v374 = vand.u32 2147483647, %v372
        %v375 = vand.u32 2147483647, %v373
        %v376 = vadd.f32 %v364, %v374
        %v377 = vadd.f32 %v365, %v375
        %378 = vset.pattern.permute.xlu0 4
        %379 = vperm.xlu0 %378, %v328
        %v380 = vpop.permute.xlu0 %379
        %v382 = vperm.slane %v325, 4
        %v383 = vperm.slane %v326, 4
        %v384 = vsub.f32 %v380, %v382
        %v385 = vsub.f32 %v380, %v383
        %v386 = vand.u32 2147483647, %v384
        %v387 = vand.u32 2147483647, %v385
        %v388 = vadd.f32 %v376, %v386
        %v389 = vadd.f32 %v377, %v387
        %390 = vset.pattern.permute.xlu0 5
        %391 = vperm.xlu0 %390, %v328
        %v392 = vpop.permute.xlu0 %391
        %v394 = vperm.slane %v325, 5
        %v395 = vperm.slane %v326, 5
        %v396 = vsub.f32 %v392, %v394
        %v397 = vsub.f32 %v392, %v395
        %v398 = vand.u32 2147483647, %v396
        %v399 = vand.u32 2147483647, %v397
        %v400 = vadd.f32 %v388, %v398
        %v401 = vadd.f32 %v389, %v399
        %402 = vset.pattern.permute.xlu0 6
        %403 = vperm.xlu0 %402, %v328
        %v404 = vpop.permute.xlu0 %403
        %v406 = vperm.slane %v325, 6
        %v407 = vperm.slane %v326, 6
        %v408 = vsub.f32 %v404, %v406
        %v409 = vsub.f32 %v404, %v407
        %v410 = vand.u32 2147483647, %v408
        %v411 = vand.u32 2147483647, %v409
        %v412 = vadd.f32 %v400, %v410
        %v413 = vadd.f32 %v401, %v411
        %414 = vset.pattern.permute.xlu0 7
        %415 = vperm.xlu0 %414, %v328
        %v416 = vpop.permute.xlu0 %415
        %v418 = vperm.slane %v325, 7
        %v419 = vperm.slane %v326, 7
        %v420 = vsub.f32 %v416, %v418
        %v421 = vsub.f32 %v416, %v419
        %v422 = vand.u32 2147483647, %v420
        %v423 = vand.u32 2147483647, %v421
        %v424 = vadd.f32 %v412, %v422
        %v425 = vadd.f32 %v413, %v423
      $region37: #{_lambda_.1} parent=31 // loop_footer
        %s316 = sadd.s32 1, %s312
      $region38: #{_lambda_.1} parent=31 // loop_footer_branch
        %311 = sbr.rel target = $region34
      $region39: #{_lambda_.1} parent=31 // loop_exit
        _
      // Predicated region
      $region40: #{_lambda_.1} parent=31 // pred_check
        %p426 = pneg %p303
      $region41: #{_lambda_.1} parent=31 // pred_check_branch
        %428 = sbr.rel (%p426) target = $region43
      $region42: #{_lambda_.1} parent=31 // pred_region
        %v429 = vld [vmem:[%s272] sm:$0xff]
        %431 = vset.pattern.permute.xlu0 0
        %432 = vperm.xlu0 %431, %v429
        %v433 = vpop.permute.xlu0 %432
        %v435 = vsub.f32 %v433, %v317
        %v436 = vsub.f32 %v433, %v318
        %v437 = vmax.f32 %v435, 0.0
        %v438 = vmax.f32 %v436, 0.0
        %439 = vst [vmem:[%s301] sm:$0xff] %v437
        %440 = vst [vmem:[%s301 + $0x8] sm:$0xff] %v438
      $region43: #{_lambda_.1} parent=31 // pred_fallthru
        _
      %p441 = scmp.ne.s32.totalorder %s23, 0
      // Predicated region
      $region44: #{_lambda_.1} parent=31 // pred_check
        %p442 = pneg %p441
      $region45: #{_lambda_.1} parent=31 // pred_check_branch
        %444 = sbr.rel (%p442) target = $region47
      $region46: #{_lambda_.1} parent=31 // pred_region
        %445 = vst [vmem:[#allocation2] sm:$0xff] %v317
        %446 = vst [vmem:[#allocation2 + $0x8] sm:$0xff] %v318
      $region47: #{_lambda_.1} parent=31 // pred_fallthru
        _
      %s447 = smul.u32 2, %s21
      %p448 = scmp.lt.s32.totalorder %s20, 1
      %s449 = scalar_select %p448, %s20, 1
      %p450 = scmp.lt.s32.totalorder %s22, 0
      %s451 = scalar_select %p450, %s22, 0
      %p452 = scmp.lt.s32.totalorder %s447, 1
      %s453 = scalar_select %p452, %s447, 1
      %s454 = smul.addr %s451, 2
      %s455 = sadd.s32 %s453, %s454
      %s456 = smul.addr %s449, 2
      %s457 = sadd.s32 %s455, %s456
      %s458 = smul.addr %s457, 8
      %s459 = scalar_lea.vmem %s3, %s458
      // Predicated region
      $region48: #{_lambda_.1} parent=31 // pred_check
        %p460 = pneg %p146
      $region49: #{_lambda_.1} parent=31 // pred_check_branch
        %462 = sbr.rel (%p460) target = $region51
      $region50: #{_lambda_.1} parent=31 // pred_region
        %s463 = smul.u32 2, %s21
      $region51: #{_lambda_.1} parent=31 // pred_fallthru
        _
    $region32: #{_lambda_.1} parent=5 // pred_fallthru
      _
    %p464 = scmp.le.s32.totalorder 2, %s9
    // Predicated region
    $region52: #{_lambda_.1} parent=5 // pred_check
      %p465 = pneg %p464
    $region53: #{_lambda_.1} parent=5 // pred_check_branch
      %467 = sbr.rel (%p465) target = $region55
    $region54: #{_lambda_.1} parent=5 // pred_region
      %s468 = ssub.s32 %s9, 2
      // Predicated region
      $region56: #{_lambda_.1} parent=54 // pred_check
        %p469 = pneg %p152
      $region57: #{_lambda_.1} parent=54 // pred_check_branch
        %471 = sbr.rel (%p469) target = $region59
      $region58: #{_lambda_.1} parent=54 // pred_region
        %s472 = smul.u32 2, %s25
        %p473 = scmp.lt.s32.totalorder %s24, 1
        %s474 = scalar_select %p473, %s24, 1
        %p475 = scmp.lt.s32.totalorder %s26, 0
        %s476 = scalar_select %p475, %s26, 0
        %p477 = scmp.lt.s32.totalorder %s472, 1
        %s478 = scalar_select %p477, %s472, 1
        %s479 = smul.addr %s476, 2
        %s480 = sadd.s32 %s478, %s479
        %s481 = smul.addr %s474, 2
        %s482 = sadd.s32 %s480, %s481
        %s483 = smul.addr %s482, 8
        %s484 = scalar_lea.vmem %s3, %s483
      $region59: #{_lambda_.1} parent=54 // pred_fallthru
        _
    $region55: #{_lambda_.1} parent=5 // pred_fallthru
      _
  $region6: #{_lambda_.1} parent=0 // loop_footer
    %s13 = sadd.s32 1, %s9
  $region7: #{_lambda_.1} parent=0 // loop_footer_branch
    %8 = sbr.rel target = $region3
  $region8: #{_lambda_.1} parent=0 // loop_exit
    _

</llo_original>
